<compile_context>
chip_gen: v7x
topology: tpu7x:2x2x1
jax: 0.10.0
libtpu: 0.0.40
codegen_flags: <defaults>
</compile_context>

<pallas_src>
import functools
import math

import jax
import jax.numpy as jnp
from jax.experimental import pallas as pl
from jax.experimental.pallas import tpu as pltpu


def _rmsnorm_kernel(x_ref, w_ref, o_ref, *, eps, inv_dim):
    # All hot-path math in f32 (matches x.float() in the PyTorch module).
    x = x_ref[...].astype(jnp.float32)
    # mean(x^2) as sum * (1/dim) with 1/dim baked as a Python constant.
    ms = jnp.sum(x * x, axis=-1, keepdims=True) * inv_dim
    normed = x * jax.lax.rsqrt(ms + eps)                    # EUP rsqrt
    # Match PyTorch order: self.norm(x.float()).type_as(x), then * weight.
    normed = normed.astype(o_ref.dtype)
    o_ref[...] = normed * w_ref[...].astype(o_ref.dtype)


def _vmem_capacity_bytes():
    """Per-core VMEM capacity; conservative v7x fallback if query fails."""
    try:
        return int(pltpu.get_tpu_info().vmem_capacity_bytes)
    except Exception:
        return 64 * 1024 * 1024  # v7x has the smallest VMEM per TensorCore


def _pick_row_tile(rows, dim, itemsize, vmem_cap):
    """Bytes-based row-tile picker for a pure HBM-streaming kernel."""
    # Sublane packing quantum: 8 rows f32, 16 bf16, 32 for 8-bit dtypes.
    sub = max(8, 32 // max(itemsize, 1))
    if rows <= sub:
        # Single full-extent block; block equals full array so no (8,)
        # divisibility requirement applies.
        return rows

    row_bytes_x = dim * itemsize
    # Per-row VMEM cost per grid step:
    #   2 double-buffered copies of the x tile + 2 of the out tile
    #   + ~2 full-tile f32 temporaries (x upcast, normed) from the body.
    bytes_per_row = 4 * row_bytes_x + 8 * dim

    # Buffers+temps budget derived from this chip's VMEM, with headroom for
    # Mosaic internal scratch:  v7x (64 MiB)  -> ~38 MiB
    #                           v5e/v6e (128) -> 64 MiB
    budget = min(int(vmem_cap * 0.60), 64 * 1024 * 1024)

    # Target ~8 MiB of x-tile per grid step (amortizes per-step overhead on
    # all generations), clamped by the VMEM budget.
    target_x_bytes = 8 * 1024 * 1024
    tile = min(target_x_bytes // max(row_bytes_x, 1),
               budget // max(bytes_per_row, 1))
    tile = max(sub, (tile // sub) * sub)
    tile = min(tile, ((rows + sub - 1) // sub) * sub)

    # v7x dual-TC load balance: prefer >= 8 grid steps, but only while the
    # x tile stays >= ~2 MiB (don't trade HBM roofline for balance).
    min_x_bytes = 2 * 1024 * 1024
    while (tile > sub
           and (rows + tile - 1) // tile < 8
           and (tile // 2) * row_bytes_x >= min_x_bytes):
        tile = max(sub, ((tile // 2) // sub) * sub)

    # Prefer an even number of grid steps so neither TC idles on a trailing
    # odd step when the "parallel" row axis is sharded across cores.
    steps = (rows + tile - 1) // tile
    if steps > 1 and steps % 2 == 1:
        cand = -(-rows // (steps + 1))                 # cdiv(rows, steps+1)
        cand = max(sub, (-(-cand // sub)) * sub)       # round up to sublanes
        if cand <= tile and (-(-rows // cand)) % 2 == 0:
            tile = cand
    return tile


def rmsnorm(x, weight, eps=1e-5, *, row_tile=None):
    """x: [..., dim]; weight: [dim]. Returns same shape/dtype as x."""
    orig_shape = x.shape
    dim = orig_shape[-1]
    rows = int(math.prod(orig_shape[:-1])) if len(orig_shape) > 1 else 1

    # TODO(synk): for dim < 128 (or dim % 128 != 0) a lane-dense re-layout
    # (rows -> lanes) would avoid masked vst.msk stores; production dims are
    # expected to be multiples of 128 so this is left as-is.
    x2d = x.reshape(rows, dim)
    w2d = weight.reshape(1, dim)

    itemsize = jnp.dtype(x.dtype).itemsize
    vmem_cap = _vmem_capacity_bytes()
    if row_tile is None:
        row_tile = _pick_row_tile(rows, dim, itemsize, vmem_cap)

    grid = (pl.cdiv(rows, row_tile),)  # partial last block masked by Pallas

    # Scoped VMEM limit: above the small defaults (16/32 MiB), below this
    # chip's physical VMEM (v7x: ~48 MiB of 64; v5e/v6e: 96 of 128).
    vmem_limit = max(32 * 1024 * 1024,
                     min(int(vmem_cap * 0.75), 96 * 1024 * 1024))

    out = pl.pallas_call(
        functools.partial(_rmsnorm_kernel, eps=float(eps), inv_dim=1.0 / dim),
        out_shape=jax.ShapeDtypeStruct((rows, dim), x.dtype),
        grid_spec=pltpu.PrefetchScalarGridSpec(
            num_scalar_prefetch=0,
            grid=grid,
            in_specs=[
                pl.BlockSpec((row_tile, dim), lambda i: (i, 0)),
                pl.BlockSpec((1, dim), lambda i: (0, 0)),   # weight resident
            ],
            out_specs=pl.BlockSpec((row_tile, dim), lambda i: (i, 0)),
        ),
        compiler_params=pltpu.CompilerParams(
            dimension_semantics=("parallel",),              # megacore on v7x
            vmem_limit_bytes=int(vmem_limit),
        ),
    )(x2d, w2d)

    return out.reshape(orig_shape)


if __name__ == "__main__":
    key = jax.random.PRNGKey(0)
    batch, seq, dim = 2, 8, 32
    x = jax.random.normal(key, (batch, seq, dim), dtype=jnp.float32)

    # Deterministic parameter init: nn.Parameter(torch.ones(dim))
    weight = jnp.ones((dim,), dtype=jnp.float32)

    out = rmsnorm(x, weight, eps=1e-5)
    out = jax.block_until_ready(out)

    # Pure-JAX reference check (matches the PyTorch forward semantics).
    xf = x.astype(jnp.float32)
    normed = xf * jax.lax.rsqrt(jnp.mean(xf * xf, axis=-1, keepdims=True) + 1e-5)
    ref = normed.astype(x.dtype) * weight.astype(x.dtype)
    assert out.shape == x.shape and out.dtype == x.dtype
    assert jnp.allclose(out, ref, atol=1e-5, rtol=1e-5)

    print("KERNEL_OK")
</pallas_src>

<mosaic_0001>
module attributes {stable_mosaic.version = 11 : i64} {
  func.func @_rmsnorm_kernel(%arg0: i32, %arg1: memref<16x32xf32, #tpu.memory_space<vmem>>, %arg2: memref<1x32xf32, #tpu.memory_space<vmem>>, %arg3: memref<16x32xf32, #tpu.memory_space<vmem>>) attributes {dimension_semantics = [#tpu.dimension_semantics<parallel>], iteration_bounds = array<i64: 1>, scalar_prefetch = 0 : i64, scratch_operands = 0 : i64, tpu.core_type = #tpu.core_type<tc>, window_params = [{transform_indices = @transform_0, window_bounds = array<i64: 16, 32>}, {pipeline_mode = #tpu.pipeline_mode<synchronous>, transform_indices = @transform_1, window_bounds = array<i64: 1, 32>}, {transform_indices = @transform_2, window_bounds = array<i64: 16, 32>}]} {
    %c0 = arith.constant 0 : index
    %c0_0 = arith.constant 0 : index
    %0 = vector.load %arg1[%c0, %c0_0] : memref<16x32xf32, #tpu.memory_space<vmem>>, vector<16x32xf32>
    %1 = arith.mulf %0, %0 : vector<16x32xf32>
    %cst = arith.constant dense<0.000000e+00> : vector<16xf32>
    %2 = vector.multi_reduction <add>, %1, %cst [1] : vector<16x32xf32> to vector<16xf32>
    %3 = vector.shape_cast %2 : vector<16xf32> to vector<16x1xf32>
    %cst_1 = arith.constant 3.125000e-02 : f32
    %4 = vector.broadcast %cst_1 : f32 to vector<16x1xf32>
    %5 = arith.mulf %3, %4 : vector<16x1xf32>
    %cst_2 = arith.constant 9.99999974E-6 : f32
    %6 = vector.broadcast %cst_2 : f32 to vector<16x1xf32>
    %7 = arith.addf %5, %6 : vector<16x1xf32>
    %8 = math.rsqrt %7 : vector<16x1xf32>
    %9 = vector.broadcast %8 : vector<16x1xf32> to vector<16x32xf32>
    %10 = arith.mulf %0, %9 : vector<16x32xf32>
    %c0_3 = arith.constant 0 : index
    %c0_4 = arith.constant 0 : index
    %11 = vector.load %arg2[%c0_3, %c0_4] : memref<1x32xf32, #tpu.memory_space<vmem>>, vector<1x32xf32>
    %12 = vector.broadcast %11 : vector<1x32xf32> to vector<16x32xf32>
    %13 = arith.mulf %10, %12 : vector<16x32xf32>
    %c0_5 = arith.constant 0 : index
    %c0_6 = arith.constant 0 : index
    %14 = vector.load %arg3[%c0_5, %c0_6] : memref<16x32xf32, #tpu.memory_space<vmem>>, vector<16x32xf32>
    tpu.vector_store %arg3[%c0_5, %c0_6], %13 {strides = array<i32>} : memref<16x32xf32, #tpu.memory_space<vmem>>, vector<16x32xf32>,
    return
  }
  func.func @transform_0(%arg0: i32) -> (i32, i32) {
    %c0_i32 = arith.constant 0 : i32
    %c0_i32_0 = arith.constant 0 : i32
    return %arg0, %c0_i32 : i32, i32
  }
  func.func @transform_1(%arg0: i32) -> (i32, i32) {
    %c0_i32 = arith.constant 0 : i32
    %c0_i32_0 = arith.constant 0 : i32
    %c0_i32_1 = arith.constant 0 : i32
    return %c0_i32, %c0_i32_0 : i32, i32
  }
  func.func @transform_2(%arg0: i32) -> (i32, i32) {
    %c0_i32 = arith.constant 0 : i32
    %c0_i32_0 = arith.constant 0 : i32
    return %arg0, %c0_i32 : i32, i32
  }
}

</mosaic_0001>

<llo_original>
// kernel: tpu_custom_call.1
$region0: #{tpu_custom_call.1}
  #allocation0 [shape = 'u32[]', space=smem, size = 0x4, offset = 0x4, fixed_abs, tag = 'smem constant byte address 0x4 - core index']
  #allocation1 [shape = 'u32[144,128]{1,0:T(1,128)}', space=vmem, size = 0x12000, scoped, tag = 'internal scratch']
  %s0 = inlined_call_operand.hbm [shape: f32[16,32], index: 0, kind: input, shape index: {}]
  %s1 = inlined_call_operand.vmem [shape: f32[1,32], index: 1, kind: input, shape index: {}]
  %s2 = inlined_call_operand.hbm [shape: f32[16,32], index: 2, kind: output, shape index: {}]
  %s3 = sld [smem:[#allocation0]]
  $region22: #{tpu_custom_call.1} parent=0
    _
  %s5 = ssub.s32 1, %s3
  %s6 = scalar_select 0, %s5, %s3
  $region1: #{tpu_custom_call.1} parent=0
    #allocation2 [shape = 'u8[8192]{0}', space=vmem, size = 0x2000, scoped, tag = 'input window, operand 0, single buffered']
    #allocation3 [shape = 's32[1]{0}', space=sflag, size = 0x4, scoped, tag = 'scoped memory for tpu_custom_call.1']
    #allocation4 [shape = 's32[1]{0}', space=sflag, size = 0x4, scoped, tag = 'scoped memory for tpu_custom_call.1']
    #allocation5 [shape = 'u8[8192]{0}', space=vmem, size = 0x2000, scoped, tag = 'output window, operand 0, single buffered']
    %7 = vsyncpa [#allocation3], 0
    %8 = vsyncpa [#allocation4], 0
    // Predicated region
    $region2: #{tpu_custom_call.1} parent=1 // pred_check
      _
    $region3: #{tpu_custom_call.1} parent=1 // pred_check_branch
      %10 = sbr.rel (0) target = $region5
    $region4: #{tpu_custom_call.1} parent=1 // pred_region
      %s12 = ssub.s32 256, 256
      %13 = vsyncadd [#allocation3], %s12
      %s14 = sshll.u32 [#allocation2], 4
      %s15 = int_to_ptr.vmem [resolvable:$true] %s14
      %20 = dma.hbm_to_vmem [thread:$0]  %s0, 256, %s15, [#allocation3], 128, 128, 8
    $region5: #{tpu_custom_call.1} parent=1 // pred_fallthru
      _
    // Predicated region
    $region6: #{tpu_custom_call.1} parent=1 // pred_check
      _
    $region7: #{tpu_custom_call.1} parent=1 // pred_check_branch
      %22 = sbr.rel (0) target = $region9
    $region8: #{tpu_custom_call.1} parent=1 // pred_region
      _
    $region9: #{tpu_custom_call.1} parent=1 // pred_fallthru
      _
    // Predicated region
    $region10: #{tpu_custom_call.1} parent=1 // pred_check
      _
    $region11: #{tpu_custom_call.1} parent=1 // pred_check_branch
      %24 = sbr.rel (0) target = $region13
    $region12: #{tpu_custom_call.1} parent=1 // pred_region
      %25 = dma.done [#allocation3], 256
    $region13: #{tpu_custom_call.1} parent=1 // pred_fallthru
      _
    %v26 = vld [vmem:[#allocation2] sm:$0xff]
    %v27 = vld [vmem:[#allocation2 + $0x8] sm:$0xff]
    %v28 = vmul.f32 %v26, %v26
    %v29 = vmul.f32 %v27, %v27
    %vm30 = vcmask 261120
    %v31 = vsel %vm30, %v28, 0.0
    %32 = vadd.xlane.f32.xlu0 %v31
    %v33 = vpop.xlane.xlu0 %32
    %v34 = vsel %vm30, %v29, 0.0
    %35 = vadd.xlane.f32.xlu0 %v34
    %v36 = vpop.xlane.xlu0 %35
    %v37 = vmul.f32 %v33, 0.03125
    %v38 = vmul.f32 %v36, 0.03125
    %v39 = vadd.f32 %v37, 1e-05
    %v40 = vadd.f32 %v38, 1e-05
    %v41 = vrsqrt.pop %v39
    %v42 = vrsqrt.pop %v40
    %v43 = vmul.f32 %v26, %v41
    %v44 = vmul.f32 %v27, %v42
    %v45 = vld [vmem:[%s1] sm:$0x1]
    %v47 = vlaneseq
    %v48 = vshrl.u32 %v47, 7
    %v49 = vsub.s32 0, %v48
    %v50 = vrot.slane %v45, %v49
    %v52 = vmul.f32 %v43, %v50
    %v53 = vmul.f32 %v44, %v50
    %54 = vst.msk [vmem:[#allocation5] sm:$0xff] %vm30, %v52
    %55 = vst.msk [vmem:[#allocation5 + $0x8] sm:$0xff] %vm30, %v53
    // Predicated region
    $region14: #{tpu_custom_call.1} parent=1 // pred_check
      _
    $region15: #{tpu_custom_call.1} parent=1 // pred_check_branch
      %57 = sbr.rel (0) target = $region17
    $region16: #{tpu_custom_call.1} parent=1 // pred_region
      %s59 = ssub.s32 256, 256
      %60 = vsyncadd [#allocation4], %s59
      %s61 = sshll.u32 [#allocation5], 4
      %s62 = int_to_ptr.vmem [resolvable:$true] %s61
      %67 = dma.vmem_to_hbm [thread:$0]  %s62, 256, %s2, [#allocation4], 128, 128, 8
    $region17: #{tpu_custom_call.1} parent=1 // pred_fallthru
      _
    // Predicated region
    $region18: #{tpu_custom_call.1} parent=1 // pred_check
      _
    $region19: #{tpu_custom_call.1} parent=1 // pred_check_branch
      %69 = sbr.rel (0) target = $region21
    $region20: #{tpu_custom_call.1} parent=1 // pred_region
      %70 = dma.done [#allocation4], 256
    $region21: #{tpu_custom_call.1} parent=1 // pred_fallthru
      _
    %71 = vsyncpa [#allocation3], 1
    %72 = vsyncpa [#allocation4], 1

</llo_original>
